<compile_context>
chip_gen: v5e
topology: v5e:2x2
jax: 0.10.0
libtpu: 0.0.40
codegen_flags: <defaults>
</compile_context>

<pallas_src>
import functools
import math

import jax
import jax.numpy as jnp
from jax.experimental import pallas as pl
from jax.experimental.pallas import tpu as pltpu

_NEG_BIG = -1e30  # additive bias for padded class columns (exp -> 0 in f32)


def arcnet_kernel(emb_ref, w_ref, colscale_ref, colbias_ref, o_ref, *,
                  s, cos_m, sin_m, exact_recip):
    emb = emb_ref[...].astype(jnp.float32)                       # (tb, D)

    # F.normalize(embedding, dim=1): x * rsqrt(max(sum x^2, eps^2))
    emb_n = emb * jax.lax.rsqrt(
        jnp.maximum(jnp.sum(emb * emb, axis=1, keepdims=True), 1e-24))

    # dotp == s * cos_theta for real classes; -1e30 for padded lane columns.
    # Weight normalization is a hoisted per-column scale (colscale); padded
    # columns carry colscale = 0 and colbias = -1e30.
    dotp = (jnp.dot(emb_n.astype(w_ref.dtype), w_ref[...],
                    preferred_element_type=jnp.float32)
            * colscale_ref[...] + colbias_ref[...])               # (tb, Cp)

    # sin_theta straight from dotp: sin^2 = max(1 - (dotp/s)^2, 0).
    inv_s2 = 1.0 / (s * s)
    sin_theta = jnp.sqrt(jnp.maximum(1.0 - dotp * dotp * inv_s2, 0.0))

    # top = exp(s*(cos(th)cos(m) - sin(th)sin(m))) = exp(cos_m*dotp - (s*sin_m)*sin_th)
    top = jnp.exp(cos_m * dotp - (s * sin_m) * sin_theta)
    scaled = jnp.exp(dotp)            # exp(s*cos_theta); exactly 0 on padded cols
    sum_others = jnp.sum(scaled, axis=1, keepdims=True) - scaled

    o_ref[...] = (top * pl.reciprocal(top + sum_others, approx=not exact_recip)
                  ).astype(o_ref.dtype)


def _round_up(x, mult):
    return ((x + mult - 1) // mult) * mult


def _pick_tiling():
    """Per-generation (batch_tile, class_rounding, vmem_limit_bytes)."""
    kind = ""
    try:
        kind = jax.devices()[0].device_kind.lower()
    except Exception:
        pass
    if "v6" in kind:
        # 2x256^2 MXU, 128 MiB VMEM: 256-row M tile, 256-lane class rounding.
        return 256, 256, 96 * 1024 * 1024
    if "v7" in kind or "7x" in kind:
        # 256-wide MXU but only 64 MiB/TC VMEM: keep 128-row tiles until the
        # C grid axis (see TODO above) lands.
        return 128, 128, 48 * 1024 * 1024
    if "v5e" in kind or "v5 lite" in kind or "v5lite" in kind:
        # 4x128^2 MXU; default scoped VMEM is only 16 MiB -> raise explicitly.
        return 128, 128, 64 * 1024 * 1024
    # Unknown chip: conservative settings that fit every generation.
    return 128, 128, 32 * 1024 * 1024


def arcnet_forward(embedding, w, *, s=20.0, m=0.1, mxu_dtype=jnp.bfloat16,
                   out_dtype=jnp.float32, block_b=None):
    B, D = embedding.shape
    D2, C = w.shape
    assert D == D2

    gen_block_b, c_mult, vmem_limit = _pick_tiling()
    if block_b is None:
        block_b = gen_block_b

    # Lane-dense class axis (unmasked vst); batch tiled in sublane multiples.
    c_pad = _round_up(C, c_mult)
    b_al = _round_up(B, 8)
    tile_b = min(block_b, b_al)
    b_pad = _round_up(b_al, tile_b)

    # Skip whole-array pads when already aligned (each pad is an extra HBM
    # round-trip of the full operand).
    emb_p = embedding if b_pad == B else jnp.pad(embedding,
                                                 ((0, b_pad - B), (0, 0)))

    # Hoisted, grid-invariant weight work: column norms in f32, then pad, then
    # a single cast to the MXU dtype.
    w_f32 = w.astype(jnp.float32)
    inv_wnorm = jax.lax.rsqrt(jnp.maximum(
        jnp.sum(w_f32 * w_f32, axis=0, keepdims=True), 1e-24))     # (1, C)
    if c_pad == C:
        w_p = w
        colscale = inv_wnorm
        colbias = jnp.zeros((1, C), jnp.float32)
    else:
        w_p = jnp.pad(w, ((0, 0), (0, c_pad - C)))
        colscale = jnp.pad(inv_wnorm, ((0, 0), (0, c_pad - C)))    # 0 on pads
        colbias = jnp.pad(jnp.zeros((1, C), jnp.float32),
                          ((0, 0), (0, c_pad - C)),
                          constant_values=_NEG_BIG)                # -1e30 on pads
    w_p = w_p.astype(mxu_dtype)

    exact_recip = jnp.dtype(mxu_dtype) == jnp.dtype(jnp.float32)
    kernel = functools.partial(
        arcnet_kernel,
        s=float(s),
        cos_m=math.cos(m),
        sin_m=math.sin(m),
        exact_recip=exact_recip,
    )

    grid = (b_pad // tile_b,)

    def run(single_buffer_resident):
        if single_buffer_resident and hasattr(pl, "Buffered"):
            # Grid-invariant blocks: a second pipeline buffer buys nothing.
            resident = {"pipeline_mode": pl.Buffered(1)}
        else:
            resident = {}
        return pl.pallas_call(
            kernel,
            out_shape=jax.ShapeDtypeStruct((b_pad, c_pad), out_dtype),
            grid=grid,
            in_specs=[
                pl.BlockSpec((tile_b, D), lambda i: (i, 0)),            # emb
                pl.BlockSpec((D, c_pad), lambda i: (0, 0), **resident),  # w (bf16)
                pl.BlockSpec((1, c_pad), lambda i: (0, 0), **resident),  # colscale
                pl.BlockSpec((1, c_pad), lambda i: (0, 0), **resident),  # colbias
            ],
            out_specs=pl.BlockSpec((tile_b, c_pad), lambda i: (i, 0)),
            compiler_params=pltpu.CompilerParams(
                dimension_semantics=("parallel",),
                vmem_limit_bytes=vmem_limit),
        )(emb_p, w_p, colscale, colbias)

    try:
        out = run(True)
    except Exception:
        # pipeline_mode=pl.Buffered(1) not supported by this JAX/Mosaic build;
        # fall back to the default (double-buffered) pipeline. Correctness is
        # identical, only VMEM headroom differs.
        out = run(False)

    if b_pad == B and c_pad == C:
        return out
    return out[:B, :C]


def arcnet_reference(embedding, w, *, s=20.0, m=0.1):
    emb_n = embedding / jnp.maximum(
        jnp.linalg.norm(embedding, axis=1, keepdims=True), 1e-12)
    w_n = w / jnp.maximum(jnp.linalg.norm(w, axis=0, keepdims=True), 1e-12)
    cos_theta = emb_n @ w_n / s
    sin_theta = jnp.sqrt(1.0 - cos_theta ** 2)
    cos_theta_m = cos_theta * jnp.cos(m) - sin_theta * jnp.sin(m)
    cos_scaled = jnp.exp(cos_theta * s)
    sum_cos = jnp.sum(cos_scaled, axis=1, keepdims=True) - cos_scaled
    top = jnp.exp(cos_theta_m * s)
    return top / (top + sum_cos)


if __name__ == "__main__":
    # Small shapes consistent with the module: batch=8, latent_dim=32, classes=16
    B, LATENT_DIM, NUM_CLASSES = 8, 32, 16
    S, M = 20.0, 0.1

    key = jax.random.PRNGKey(0)
    k_emb, k_w = jax.random.split(key)

    embedding = jax.random.normal(k_emb, (B, LATENT_DIM), dtype=jnp.float32)
    # Matches torch.rand(latent_dim, num_classes): uniform [0, 1)
    w = jax.random.uniform(k_w, (LATENT_DIM, NUM_CLASSES), dtype=jnp.float32)

    ref = arcnet_reference(embedding, w, s=S, m=M)

    # f32-MXU path (exact reciprocal): tight check vs the PyTorch math.
    out_f32 = jax.block_until_ready(
        arcnet_forward(embedding, w, s=S, m=M, mxu_dtype=jnp.float32))
    assert out_f32.shape == (B, NUM_CLASSES)
    assert jnp.allclose(out_f32, ref, atol=2e-3, rtol=2e-3)

    # bf16-MXU / f32-out path (default performance path).
    out_bf16 = jax.block_until_ready(arcnet_forward(embedding, w, s=S, m=M))
    assert out_bf16.shape == (B, NUM_CLASSES)
    assert jnp.allclose(out_bf16, ref, atol=3e-2, rtol=3e-2)

    # bf16-MXU / bf16-out path (halves HBM writeback when tolerated).
    out_bf16o = jax.block_until_ready(
        arcnet_forward(embedding, w, s=S, m=M, out_dtype=jnp.bfloat16))
    assert out_bf16o.shape == (B, NUM_CLASSES)
    assert out_bf16o.dtype == jnp.bfloat16
    assert jnp.allclose(out_bf16o.astype(jnp.float32), ref, atol=3e-2, rtol=3e-2)

    print("KERNEL_OK")
</pallas_src>

<mosaic_0001>
module attributes {stable_mosaic.version = 11 : i64} {
  func.func @arcnet_kernel(%arg0: i32, %arg1: memref<8x32xf32, #tpu.memory_space<vmem>>, %arg2: memref<32x128xf32, #tpu.memory_space<vmem>>, %arg3: memref<1x128xf32, #tpu.memory_space<vmem>>, %arg4: memref<1x128xf32, #tpu.memory_space<vmem>>, %arg5: memref<8x128xf32, #tpu.memory_space<vmem>>) attributes {dimension_semantics = [#tpu.dimension_semantics<parallel>], iteration_bounds = array<i64: 1>, scalar_prefetch = 0 : i64, scratch_operands = 0 : i64, tpu.core_type = #tpu.core_type<tc>, window_params = [{transform_indices = @transform_0, window_bounds = array<i64: 8, 32>}, {pipeline_mode = #tpu.pipeline_mode<synchronous>, transform_indices = @transform_1, window_bounds = array<i64: 32, 128>}, {pipeline_mode = #tpu.pipeline_mode<synchronous>, transform_indices = @transform_2, window_bounds = array<i64: 1, 128>}, {pipeline_mode = #tpu.pipeline_mode<synchronous>, transform_indices = @transform_3, window_bounds = array<i64: 1, 128>}, {transform_indices = @transform_4, window_bounds = array<i64: 8, 128>}]} {
    %c0 = arith.constant 0 : index
    %c0_0 = arith.constant 0 : index
    %0 = vector.load %arg1[%c0, %c0_0] : memref<8x32xf32, #tpu.memory_space<vmem>>, vector<8x32xf32>
    %1 = arith.mulf %0, %0 : vector<8x32xf32>
    %cst = arith.constant dense<0.000000e+00> : vector<8xf32>
    %2 = vector.multi_reduction <add>, %1, %cst [1] : vector<8x32xf32> to vector<8xf32>
    %3 = vector.shape_cast %2 : vector<8xf32> to vector<8x1xf32>
    %cst_1 = arith.constant 1.000000e-24 : f32
    %4 = vector.broadcast %cst_1 : f32 to vector<8x1xf32>
    %5 = arith.maximumf %3, %4 : vector<8x1xf32>
    %6 = math.rsqrt %5 : vector<8x1xf32>
    %7 = vector.broadcast %6 : vector<8x1xf32> to vector<8x32xf32>
    %8 = arith.mulf %0, %7 : vector<8x32xf32>
    %c0_2 = arith.constant 0 : index
    %c0_3 = arith.constant 0 : index
    %9 = vector.load %arg2[%c0_2, %c0_3] : memref<32x128xf32, #tpu.memory_space<vmem>>, vector<32x128xf32>
    %cst_4 = arith.constant dense<0.000000e+00> : vector<8x128xf32>
    %10 = tpu.matmul %8, %9, %cst_4 {dimension_numbers = #tpu.dot_dimension_numbers<[1], [0], [0], [1], [0, 0, 1, 1], [], []>} : vector<8x32xf32>, vector<32x128xf32>, vector<8x128xf32> -> vector<8x128xf32>
    %c0_5 = arith.constant 0 : index
    %c0_6 = arith.constant 0 : index
    %11 = vector.load %arg3[%c0_5, %c0_6] : memref<1x128xf32, #tpu.memory_space<vmem>>, vector<1x128xf32>
    %12 = vector.broadcast %11 : vector<1x128xf32> to vector<8x128xf32>
    %13 = arith.mulf %10, %12 : vector<8x128xf32>
    %c0_7 = arith.constant 0 : index
    %c0_8 = arith.constant 0 : index
    %14 = vector.load %arg4[%c0_7, %c0_8] : memref<1x128xf32, #tpu.memory_space<vmem>>, vector<1x128xf32>
    %15 = vector.broadcast %14 : vector<1x128xf32> to vector<8x128xf32>
    %16 = arith.addf %13, %15 : vector<8x128xf32>
    %17 = arith.mulf %16, %16 : vector<8x128xf32>
    %cst_9 = arith.constant 2.500000e-03 : f32
    %18 = vector.broadcast %cst_9 : f32 to vector<8x128xf32>
    %19 = arith.mulf %17, %18 : vector<8x128xf32>
    %cst_10 = arith.constant 1.000000e+00 : f32
    %20 = vector.broadcast %cst_10 : f32 to vector<8x128xf32>
    %21 = arith.subf %20, %19 : vector<8x128xf32>
    %cst_11 = arith.constant 0.000000e+00 : f32
    %22 = vector.broadcast %cst_11 : f32 to vector<8x128xf32>
    %23 = arith.maximumf %21, %22 : vector<8x128xf32>
    %24 = math.sqrt %23 : vector<8x128xf32>
    %cst_12 = arith.constant 0.995004177 : f32
    %25 = vector.broadcast %cst_12 : f32 to vector<8x128xf32>
    %26 = arith.mulf %25, %16 : vector<8x128xf32>
    %cst_13 = arith.constant 1.99666834 : f32
    %27 = vector.broadcast %cst_13 : f32 to vector<8x128xf32>
    %28 = arith.mulf %27, %24 : vector<8x128xf32>
    %29 = arith.subf %26, %28 : vector<8x128xf32>
    %30 = math.exp %29 : vector<8x128xf32>
    %31 = math.exp %16 : vector<8x128xf32>
    %cst_14 = arith.constant dense<0.000000e+00> : vector<8xf32>
    %32 = vector.multi_reduction <add>, %31, %cst_14 [1] : vector<8x128xf32> to vector<8xf32>
    %33 = vector.shape_cast %32 : vector<8xf32> to vector<8x1xf32>
    %34 = vector.broadcast %33 : vector<8x1xf32> to vector<8x128xf32>
    %35 = arith.subf %34, %31 : vector<8x128xf32>
    %36 = arith.addf %30, %35 : vector<8x128xf32>
    %37 = tpu.reciprocal %36 : vector<8x128xf32> -> vector<8x128xf32>
    %38 = arith.mulf %30, %37 : vector<8x128xf32>
    %c0_15 = arith.constant 0 : index
    %c0_16 = arith.constant 0 : index
    %39 = vector.load %arg5[%c0_15, %c0_16] : memref<8x128xf32, #tpu.memory_space<vmem>>, vector<8x128xf32>
    tpu.vector_store %arg5[%c0_15, %c0_16], %38 {strides = array<i32>} : memref<8x128xf32, #tpu.memory_space<vmem>>, vector<8x128xf32>,
    return
  }
  func.func @transform_0(%arg0: i32) -> (i32, i32) {
    %c0_i32 = arith.constant 0 : i32
    %c0_i32_0 = arith.constant 0 : i32
    return %arg0, %c0_i32 : i32, i32
  }
  func.func @transform_1(%arg0: i32) -> (i32, i32) {
    %c0_i32 = arith.constant 0 : i32
    %c0_i32_0 = arith.constant 0 : i32
    %c0_i32_1 = arith.constant 0 : i32
    return %c0_i32, %c0_i32_0 : i32, i32
  }
  func.func @transform_2(%arg0: i32) -> (i32, i32) {
    %c0_i32 = arith.constant 0 : i32
    %c0_i32_0 = arith.constant 0 : i32
    %c0_i32_1 = arith.constant 0 : i32
    return %c0_i32, %c0_i32_0 : i32, i32
  }
  func.func @transform_3(%arg0: i32) -> (i32, i32) {
    %c0_i32 = arith.constant 0 : i32
    %c0_i32_0 = arith.constant 0 : i32
    %c0_i32_1 = arith.constant 0 : i32
    return %c0_i32, %c0_i32_0 : i32, i32
  }
  func.func @transform_4(%arg0: i32) -> (i32, i32) {
    %c0_i32 = arith.constant 0 : i32
    %c0_i32_0 = arith.constant 0 : i32
    return %arg0, %c0_i32 : i32, i32
  }
}

module attributes {stable_mosaic.version = 11 : i64} {
  func.func @arcnet_kernel(%arg0: i32, %arg1: memref<8x32xf32, #tpu.memory_space<vmem>>, %arg2: memref<32x128xf32, #tpu.memory_space<vmem>>, %arg3: memref<1x128xf32, #tpu.memory_space<vmem>>, %arg4: memref<1x128xf32, #tpu.memory_space<vmem>>, %arg5: memref<8x128xf32, #tpu.memory_space<vmem>>) attributes {dimension_semantics = [#tpu.dimension_semantics<parallel>], iteration_bounds = array<i64: 1>, scalar_prefetch = 0 : i64, scratch_operands = 0 : i64, tpu.core_type = #tpu.core_type<tc>, window_params = [{transform_indices = @transform_0, window_bounds = array<i64: 8, 32>}, {pipeline_mode = #tpu.pipeline_mode<synchronous>, transform_indices = @transform_1, window_bounds = array<i64: 32, 128>}, {pipeline_mode = #tpu.pipeline_mode<synchronous>, transform_indices = @transform_2, window_bounds = array<i64: 1, 128>}, {pipeline_mode = #tpu.pipeline_mode<synchronous>, transform_indices = @transform_3, window_bounds = array<i64: 1, 128>}, {transform_indices = @transform_4, window_bounds = array<i64: 8, 128>}]} {
    %c0 = arith.constant 0 : index
    %c0_0 = arith.constant 0 : index
    %0 = vector.load %arg1[%c0, %c0_0] : memref<8x32xf32, #tpu.memory_space<vmem>>, vector<8x32xf32>
    %1 = arith.mulf %0, %0 : vector<8x32xf32>
    %cst = arith.constant dense<0.000000e+00> : vector<8xf32>
    %2 = vector.multi_reduction <add>, %1, %cst [1] : vector<8x32xf32> to vector<8xf32>
    %3 = vector.shape_cast %2 : vector<8xf32> to vector<8x1xf32>
    %cst_1 = arith.constant 1.000000e-24 : f32
    %4 = vector.broadcast %cst_1 : f32 to vector<8x1xf32>
    %5 = arith.maximumf %3, %4 : vector<8x1xf32>
    %6 = math.rsqrt %5 : vector<8x1xf32>
    %7 = vector.broadcast %6 : vector<8x1xf32> to vector<8x32xf32>
    %8 = arith.mulf %0, %7 : vector<8x32xf32>
    %c0_2 = arith.constant 0 : index
    %c0_3 = arith.constant 0 : index
    %9 = vector.load %arg2[%c0_2, %c0_3] : memref<32x128xf32, #tpu.memory_space<vmem>>, vector<32x128xf32>
    %cst_4 = arith.constant dense<0.000000e+00> : vector<8x128xf32>
    %10 = tpu.matmul %8, %9, %cst_4 {dimension_numbers = #tpu.dot_dimension_numbers<[1], [0], [0], [1], [0, 0, 1, 1], [], []>} : vector<8x32xf32>, vector<32x128xf32>, vector<8x128xf32> -> vector<8x128xf32>
    %c0_5 = arith.constant 0 : index
    %c0_6 = arith.constant 0 : index
    %11 = vector.load %arg3[%c0_5, %c0_6] : memref<1x128xf32, #tpu.memory_space<vmem>>, vector<1x128xf32>
    %12 = vector.broadcast %11 : vector<1x128xf32> to vector<8x128xf32>
    %13 = arith.mulf %10, %12 : vector<8x128xf32>
    %c0_7 = arith.constant 0 : index
    %c0_8 = arith.constant 0 : index
    %14 = vector.load %arg4[%c0_7, %c0_8] : memref<1x128xf32, #tpu.memory_space<vmem>>, vector<1x128xf32>
    %15 = vector.broadcast %14 : vector<1x128xf32> to vector<8x128xf32>
    %16 = arith.addf %13, %15 : vector<8x128xf32>
    %17 = arith.mulf %16, %16 : vector<8x128xf32>
    %cst_9 = arith.constant 2.500000e-03 : f32
    %18 = vector.broadcast %cst_9 : f32 to vector<8x128xf32>
    %19 = arith.mulf %17, %18 : vector<8x128xf32>
    %cst_10 = arith.constant 1.000000e+00 : f32
    %20 = vector.broadcast %cst_10 : f32 to vector<8x128xf32>
    %21 = arith.subf %20, %19 : vector<8x128xf32>
    %cst_11 = arith.constant 0.000000e+00 : f32
    %22 = vector.broadcast %cst_11 : f32 to vector<8x128xf32>
    %23 = arith.maximumf %21, %22 : vector<8x128xf32>
    %24 = math.sqrt %23 : vector<8x128xf32>
    %cst_12 = arith.constant 0.995004177 : f32
    %25 = vector.broadcast %cst_12 : f32 to vector<8x128xf32>
    %26 = arith.mulf %25, %16 : vector<8x128xf32>
    %cst_13 = arith.constant 1.99666834 : f32
    %27 = vector.broadcast %cst_13 : f32 to vector<8x128xf32>
    %28 = arith.mulf %27, %24 : vector<8x128xf32>
    %29 = arith.subf %26, %28 : vector<8x128xf32>
    %30 = math.exp %29 : vector<8x128xf32>
    %31 = math.exp %16 : vector<8x128xf32>
    %cst_14 = arith.constant dense<0.000000e+00> : vector<8xf32>
    %32 = vector.multi_reduction <add>, %31, %cst_14 [1] : vector<8x128xf32> to vector<8xf32>
    %33 = vector.shape_cast %32 : vector<8xf32> to vector<8x1xf32>
    %34 = vector.broadcast %33 : vector<8x1xf32> to vector<8x128xf32>
    %35 = arith.subf %34, %31 : vector<8x128xf32>
    %36 = arith.addf %30, %35 : vector<8x128xf32>
    %37 = tpu.reciprocal %36 : vector<8x128xf32> -> vector<8x128xf32>
    %38 = arith.mulf %30, %37 : vector<8x128xf32>
    %c0_15 = arith.constant 0 : index
    %c0_16 = arith.constant 0 : index
    %39 = vector.load %arg5[%c0_15, %c0_16] : memref<8x128xf32, #tpu.memory_space<vmem>>, vector<8x128xf32>
    tpu.vector_store %arg5[%c0_15, %c0_16], %38 {strides = array<i32>} : memref<8x128xf32, #tpu.memory_space<vmem>>, vector<8x128xf32>,
    return
  }
  func.func @transform_0(%arg0: i32) -> (i32, i32) {
    %c0_i32 = arith.constant 0 : i32
    %c0_i32_0 = arith.constant 0 : i32
    return %arg0, %c0_i32 : i32, i32
  }
  func.func @transform_1(%arg0: i32) -> (i32, i32) {
    %c0_i32 = arith.constant 0 : i32
    %c0_i32_0 = arith.constant 0 : i32
    %c0_i32_1 = arith.constant 0 : i32
    return %c0_i32, %c0_i32_0 : i32, i32
  }
  func.func @transform_2(%arg0: i32) -> (i32, i32) {
    %c0_i32 = arith.constant 0 : i32
    %c0_i32_0 = arith.constant 0 : i32
    %c0_i32_1 = arith.constant 0 : i32
    return %c0_i32, %c0_i32_0 : i32, i32
  }
  func.func @transform_3(%arg0: i32) -> (i32, i32) {
    %c0_i32 = arith.constant 0 : i32
    %c0_i32_0 = arith.constant 0 : i32
    %c0_i32_1 = arith.constant 0 : i32
    return %c0_i32, %c0_i32_0 : i32, i32
  }
  func.func @transform_4(%arg0: i32) -> (i32, i32) {
    %c0_i32 = arith.constant 0 : i32
    %c0_i32_0 = arith.constant 0 : i32
    return %arg0, %c0_i32 : i32, i32
  }
}

</mosaic_0001>

<llo_original>
// kernel: tpu_custom_call.1
$region0: #{tpu_custom_call.1}
  #allocation0 [shape = 'u32[]', space=smem, size = 0x4, offset = 0x4, fixed_abs, tag = 'smem constant byte address 0x4 - core index']
  #allocation1 [shape = 'u32[72,128]{1,0:T(1,128)}', space=vmem, size = 0x9000, scoped, tag = 'internal scratch']
  %s0 = inlined_call_operand.hbm [shape: f32[8,32], index: 0, kind: input, shape index: {}]
  %s1 = inlined_call_operand.hbm [shape: f32[32,128], index: 1, kind: input, shape index: {}]
  %s2 = inlined_call_operand.vmem [shape: f32[1,128], index: 2, kind: input, shape index: {}]
  %s3 = inlined_call_operand.vmem [shape: f32[1,128], index: 3, kind: input, shape index: {}]
  %s4 = inlined_call_operand.hbm [shape: f32[8,128], index: 4, kind: output, shape index: {}]
  %s5 = sld [smem:[#allocation0]]
  $region34: #{tpu_custom_call.1} parent=0
    _
  %s7 = ssub.s32 1, %s5
  %s8 = scalar_select 0, %s7, %s5
  $region1: #{tpu_custom_call.1} parent=0
    #allocation2 [shape = 'u8[4096]{0}', space=vmem, size = 0x1000, scoped, tag = 'input window, operand 0, single buffered']
    #allocation3 [shape = 's32[1]{0}', space=sflag, size = 0x4, scoped, tag = 'scoped memory for tpu_custom_call.1']
    #allocation4 [shape = 's32[1]{0}', space=sflag, size = 0x4, scoped, tag = 'scoped memory for tpu_custom_call.1']
    #allocation5 [shape = 'u8[16384]{0}', space=vmem, size = 0x4000, scoped, tag = 'input window, operand 1, single buffered']
    #allocation6 [shape = 's32[1]{0}', space=sflag, size = 0x4, scoped, tag = 'scoped memory for tpu_custom_call.1']
    #allocation7 [shape = 'u8[4096]{0}', space=vmem, size = 0x1000, scoped, tag = 'output window, operand 0, single buffered']
    %9 = vsyncpa [#allocation3], 0
    %10 = vsyncpa [#allocation6], 0
    %11 = vsyncpa [#allocation4], 0
    // Predicated region
    $region2: #{tpu_custom_call.1} parent=1 // pred_check
      _
    $region3: #{tpu_custom_call.1} parent=1 // pred_check_branch
      %13 = sbr.rel (0) target = $region5
    $region4: #{tpu_custom_call.1} parent=1 // pred_region
      %15 = vsyncadd [#allocation3], 0
      %s17 = sshll.u32 %s0, 4
      %s18 = int_to_ptr.hbm [resolvable:$true] %s17
      %s19 = sshll.u32 [#allocation2], 4
      %s20 = int_to_ptr.vmem [resolvable:$true] %s19
      %22 = dma.hbm_to_vmem [thread:$0]  %s18, 128, %s20, [#allocation3]
    $region5: #{tpu_custom_call.1} parent=1 // pred_fallthru
      _
    // Predicated region
    $region6: #{tpu_custom_call.1} parent=1 // pred_check
      _
    $region7: #{tpu_custom_call.1} parent=1 // pred_check_branch
      %24 = sbr.rel (0) target = $region9
    $region8: #{tpu_custom_call.1} parent=1 // pred_region
      %26 = vsyncadd [#allocation6], 0
      %s27 = sshll.u32 %s1, 4
      %s28 = int_to_ptr.hbm [resolvable:$true] %s27
      %s29 = sshll.u32 [#allocation5], 4
      %s30 = int_to_ptr.vmem [resolvable:$true] %s29
      %35 = dma.hbm_to_vmem [thread:$0]  %s28, 512, %s30, [#allocation6], 128, 128, 8
    $region9: #{tpu_custom_call.1} parent=1 // pred_fallthru
      _
    // Predicated region
    $region10: #{tpu_custom_call.1} parent=1 // pred_check
      _
    $region11: #{tpu_custom_call.1} parent=1 // pred_check_branch
      %37 = sbr.rel (0) target = $region13
    $region12: #{tpu_custom_call.1} parent=1 // pred_region
      _
    $region13: #{tpu_custom_call.1} parent=1 // pred_fallthru
      _
    // Predicated region
    $region14: #{tpu_custom_call.1} parent=1 // pred_check
      _
    $region15: #{tpu_custom_call.1} parent=1 // pred_check_branch
      %39 = sbr.rel (0) target = $region17
    $region16: #{tpu_custom_call.1} parent=1 // pred_region
      _
    $region17: #{tpu_custom_call.1} parent=1 // pred_fallthru
      _
    // Predicated region
    $region18: #{tpu_custom_call.1} parent=1 // pred_check
      _
    $region19: #{tpu_custom_call.1} parent=1 // pred_check_branch
      %41 = sbr.rel (0) target = $region21
    $region20: #{tpu_custom_call.1} parent=1 // pred_region
      %43 = dma.done [#allocation3], 128
    $region21: #{tpu_custom_call.1} parent=1 // pred_fallthru
      _
    // Predicated region
    $region22: #{tpu_custom_call.1} parent=1 // pred_check
      _
    $region23: #{tpu_custom_call.1} parent=1 // pred_check_branch
      %45 = sbr.rel (0) target = $region25
    $region24: #{tpu_custom_call.1} parent=1 // pred_region
      %47 = dma.done [#allocation6], 512
    $region25: #{tpu_custom_call.1} parent=1 // pred_fallthru
      _
    %v48 = vld [vmem:[#allocation2] sm:$0xff]
    %v49 = vmul.f32 %v48, %v48
    %vm50 = vcmask 261120
    %v51 = vsel %vm50, %v49, 0.0
    %52 = vadd.xlane.f32.xlu0 %v51
    %v53 = vpop.xlane.xlu0 %52
    %v54 = vmax.f32 %v53, 1e-24
    %v55 = vrsqrt.pop %v54
    %v56 = vmul.f32 %v55, %v54
    %v57 = vmul.f32 %v56, %v55
    %v58 = vmul.f32 0.5, %v57
    %v59 = vsub.f32 1.5, %v58
    %v60 = vmul.f32 %v55, %v59
    %vm61 = vweird.f32 %v54
    %vm62 = vweird.f32 %v55
    %vm63 = vmor %vm61, %vm62
    %v64 = vsel %vm63, %v55, %v60
    %v65 = vmul.f32 %v48, %v64
    %v66 = vld [vmem:[#allocation5] sm:$0xff]
    %v67 = vld [vmem:[#allocation5 + $0x8] sm:$0xff]
    %v68 = vld [vmem:[#allocation5 + $0x10] sm:$0xff]
    %v69 = vld [vmem:[#allocation5 + $0x18] sm:$0xff]
    %v71 = vsel %vm50, %v65, 0
    %73 = vmatpush.msra.mxu0 0.0
    %74 = vmatpush.msra.mxu0 0.0
    %75 = vmatpush.msra.mxu0 0.0
    %76 = vmatpush.msra.mxu0 0.0
    %77 = vmatpush.msra.mxu0 0.0
    %78 = vmatpush.msra.mxu0 0.0
    %79 = vmatpush.msra.mxu0 0.0
    %80 = vmatpush.msra.mxu0 0.0
    %81 = vmatpush.msra.mxu0 0.0
    %82 = vmatpush.msra.mxu0 0.0
    %83 = vmatpush.msra.mxu0 0.0
    %84 = vmatpush.msra.mxu0 0.0
    %85 = vmatpush.msra.mxu0 %v69
    %86 = vmatpush.msra.mxu0 %v68
    %87 = vmatpush.msra.mxu0 %v67
    %88 = vmatpush.msra.mxu0 %v66
    %89 = vmatmul.f32.gmra.mxu0 %v71
    %v90 = vpop.f32.mrf.mxu0
    %v91 = vadd.f32 0.0, %v90
    %92 = vdwg.mxu0
    %v93 = vld [vmem:[%s2] sm:$0x1]
    %v95 = vperm.slane %v93, 0
    %v97 = vmul.f32 %v91, %v95
    %v98 = vld [vmem:[%s3] sm:$0x1]
    %v100 = vperm.slane %v98, 0
    %v102 = vadd.f32 %v97, %v100
    %v103 = vmul.f32 %v102, %v102
    %v104 = vmul.f32 %v103, 0.0025
    %v105 = vsub.f32 1.0, %v104
    %v106 = vmax.f32 %v105, 0.0
    %v107 = vrsqrt.pop %v106
    %v108 = vmul.f32 %v107, %v106
    %v109 = vmul.f32 %v108, %v107
    %v110 = vmul.f32 0.5, %v109
    %v111 = vsub.f32 1.5, %v110
    %v112 = vmul.f32 %v107, %v111
    %v113 = vmul.f32 %v106, %v112
    %vm114 = vcmp.eq.f32.partialorder %v106, inf
    %v115 = vsel %vm114, %v106, %v113
    %vm116 = vcmp.eq.f32.partialorder %v106, 0.0
    %v117 = vand.u32 %v106, 2147483648
    %v118 = vsel %vm116, %v117, %v115
    %v119 = vmul.f32 %v102, 0.9950042
    %v120 = vmul.f32 %v118, 1.9966683
    %v121 = vsub.f32 %v119, %v120
    %v122 = vmul.f32 %v121, 1.442695
    %v123 = vpow.pop %v122
    %v124 = vmul.f32 %v102, 1.442695
    %v125 = vpow.pop %v124
    %126 = vadd.xlane.f32.xlu0 %v125
    %v127 = vpop.xlane.xlu0 %126
    %v128 = vsub.f32 %v127, %v125
    %v129 = vadd.f32 %v123, %v128
    %v130 = vrcp.pop %v129
    %v131 = vmul.f32 %v129, %v130
    %v132 = vsub.f32 1.0, %v131
    %v133 = vmul.f32 %v130, %v132
    %v134 = vadd.f32 %v130, %v133
    %vm135 = vweird.f32 %v129
    %vm136 = vweird.f32 %v130
    %vm137 = vmor %vm135, %vm136
    %v138 = vsel %vm137, %v130, %v134
    %v139 = vand.u32 2147483647, %v129
    %vm140 = vcmp.eq.f32.partialorder %v139, 8.507059e+37
    %v141 = vand.u32 %v129, 2147483648
    %v142 = vor.u32 1.1754944e-38, %v141
    %v143 = vsel %vm140, %v142, %v138
    %v144 = vmul.f32 %v123, %v143
    %145 = vst [vmem:[#allocation7] sm:$0xff] %v144
    // Predicated region
    $region26: #{tpu_custom_call.1} parent=1 // pred_check
      _
    $region27: #{tpu_custom_call.1} parent=1 // pred_check_branch
      %147 = sbr.rel (0) target = $region29
    $region28: #{tpu_custom_call.1} parent=1 // pred_region
      %149 = vsyncadd [#allocation4], 0
      %s151 = sshll.u32 [#allocation7], 4
      %s152 = int_to_ptr.vmem [resolvable:$true] %s151
      %s153 = sshll.u32 %s4, 4
      %s154 = int_to_ptr.hbm [resolvable:$true] %s153
      %156 = dma.vmem_to_hbm [thread:$0]  %s152, 128, %s154, [#allocation4]
    $region29: #{tpu_custom_call.1} parent=1 // pred_fallthru
      _
    // Predicated region
    $region30: #{tpu_custom_call.1} parent=1 // pred_check
      _
    $region31: #{tpu_custom_call.1} parent=1 // pred_check_branch
      %158 = sbr.rel (0) target = $region33
    $region32: #{tpu_custom_call.1} parent=1 // pred_region
      %160 = dma.done [#allocation4], 128
    $region33: #{tpu_custom_call.1} parent=1 // pred_fallthru
      _
    %161 = vsyncpa [#allocation3], 1
    %162 = vsyncpa [#allocation6], 1
    %163 = vsyncpa [#allocation4], 1

// kernel: tpu_custom_call.1
$region0: #{tpu_custom_call.1}
  #allocation0 [shape = 'u32[]', space=smem, size = 0x4, offset = 0x4, fixed_abs, tag = 'smem constant byte address 0x4 - core index']
  #allocation1 [shape = 'u32[72,128]{1,0:T(1,128)}', space=vmem, size = 0x9000, scoped, tag = 'internal scratch']
  %s0 = inlined_call_operand.hbm [shape: f32[8,32], index: 0, kind: input, shape index: {}]
  %s1 = inlined_call_operand.hbm [shape: f32[32,128], index: 1, kind: input, shape index: {}]
  %s2 = inlined_call_operand.vmem [shape: f32[1,128], index: 2, kind: input, shape index: {}]
  %s3 = inlined_call_operand.vmem [shape: f32[1,128], index: 3, kind: input, shape index: {}]
  %s4 = inlined_call_operand.hbm [shape: f32[8,128], index: 4, kind: output, shape index: {}]
  %s5 = sld [smem:[#allocation0]]
  $region34: #{tpu_custom_call.1} parent=0
    _
  %s7 = ssub.s32 1, %s5
  %s8 = scalar_select 0, %s7, %s5
  $region1: #{tpu_custom_call.1} parent=0
    #allocation2 [shape = 'u8[4096]{0}', space=vmem, size = 0x1000, scoped, tag = 'input window, operand 0, single buffered']
    #allocation3 [shape = 's32[1]{0}', space=sflag, size = 0x4, scoped, tag = 'scoped memory for tpu_custom_call.1']
    #allocation4 [shape = 's32[1]{0}', space=sflag, size = 0x4, scoped, tag = 'scoped memory for tpu_custom_call.1']
    #allocation5 [shape = 'u8[16384]{0}', space=vmem, size = 0x4000, scoped, tag = 'input window, operand 1, single buffered']
    #allocation6 [shape = 's32[1]{0}', space=sflag, size = 0x4, scoped, tag = 'scoped memory for tpu_custom_call.1']
    #allocation7 [shape = 'u8[4096]{0}', space=vmem, size = 0x1000, scoped, tag = 'output window, operand 0, single buffered']
    %9 = vsyncpa [#allocation3], 0
    %10 = vsyncpa [#allocation6], 0
    %11 = vsyncpa [#allocation4], 0
    // Predicated region
    $region2: #{tpu_custom_call.1} parent=1 // pred_check
      _
    $region3: #{tpu_custom_call.1} parent=1 // pred_check_branch
      %13 = sbr.rel (0) target = $region5
    $region4: #{tpu_custom_call.1} parent=1 // pred_region
      %15 = vsyncadd [#allocation3], 0
      %s17 = sshll.u32 %s0, 4
      %s18 = int_to_ptr.hbm [resolvable:$true] %s17
      %s19 = sshll.u32 [#allocation2], 4
      %s20 = int_to_ptr.vmem [resolvable:$true] %s19
      %22 = dma.hbm_to_vmem [thread:$0]  %s18, 128, %s20, [#allocation3]
    $region5: #{tpu_custom_call.1} parent=1 // pred_fallthru
      _
    // Predicated region
    $region6: #{tpu_custom_call.1} parent=1 // pred_check
      _
    $region7: #{tpu_custom_call.1} parent=1 // pred_check_branch
      %24 = sbr.rel (0) target = $region9
    $region8: #{tpu_custom_call.1} parent=1 // pred_region
      %26 = vsyncadd [#allocation6], 0
      %s27 = sshll.u32 %s1, 4
      %s28 = int_to_ptr.hbm [resolvable:$true] %s27
      %s29 = sshll.u32 [#allocation5], 4
      %s30 = int_to_ptr.vmem [resolvable:$true] %s29
      %35 = dma.hbm_to_vmem [thread:$0]  %s28, 512, %s30, [#allocation6], 128, 128, 8
    $region9: #{tpu_custom_call.1} parent=1 // pred_fallthru
      _
    // Predicated region
    $region10: #{tpu_custom_call.1} parent=1 // pred_check
      _
    $region11: #{tpu_custom_call.1} parent=1 // pred_check_branch
      %37 = sbr.rel (0) target = $region13
    $region12: #{tpu_custom_call.1} parent=1 // pred_region
      _
    $region13: #{tpu_custom_call.1} parent=1 // pred_fallthru
      _
    // Predicated region
    $region14: #{tpu_custom_call.1} parent=1 // pred_check
      _
    $region15: #{tpu_custom_call.1} parent=1 // pred_check_branch
      %39 = sbr.rel (0) target = $region17
    $region16: #{tpu_custom_call.1} parent=1 // pred_region
      _
    $region17: #{tpu_custom_call.1} parent=1 // pred_fallthru
      _
    // Predicated region
    $region18: #{tpu_custom_call.1} parent=1 // pred_check
      _
    $region19: #{tpu_custom_call.1} parent=1 // pred_check_branch
      %41 = sbr.rel (0) target = $region21
    $region20: #{tpu_custom_call.1} parent=1 // pred_region
      %43 = dma.done [#allocation3], 128
    $region21: #{tpu_custom_call.1} parent=1 // pred_fallthru
      _
    // Predicated region
    $region22: #{tpu_custom_call.1} parent=1 // pred_check
      _
    $region23: #{tpu_custom_call.1} parent=1 // pred_check_branch
      %45 = sbr.rel (0) target = $region25
    $region24: #{tpu_custom_call.1} parent=1 // pred_region
      %47 = dma.done [#allocation6], 512
    $region25: #{tpu_custom_call.1} parent=1 // pred_fallthru
      _
    %v48 = vld [vmem:[#allocation2] sm:$0xff]
    %v49 = vmul.f32 %v48, %v48
    %vm50 = vcmask 261120
    %v51 = vsel %vm50, %v49, 0.0
    %52 = vadd.xlane.f32.xlu0 %v51
    %v53 = vpop.xlane.xlu0 %52
    %v54 = vmax.f32 %v53, 1e-24
    %v55 = vrsqrt.pop %v54
    %v56 = vmul.f32 %v55, %v54
    %v57 = vmul.f32 %v56, %v55
    %v58 = vmul.f32 0.5, %v57
    %v59 = vsub.f32 1.5, %v58
    %v60 = vmul.f32 %v55, %v59
    %vm61 = vweird.f32 %v54
    %vm62 = vweird.f32 %v55
    %vm63 = vmor %vm61, %vm62
    %v64 = vsel %vm63, %v55, %v60
    %v65 = vmul.f32 %v48, %v64
    %v66 = vld [vmem:[#allocation5] sm:$0xff]
    %v67 = vld [vmem:[#allocation5 + $0x8] sm:$0xff]
    %v68 = vld [vmem:[#allocation5 + $0x10] sm:$0xff]
    %v69 = vld [vmem:[#allocation5 + $0x18] sm:$0xff]
    %v71 = vsel %vm50, %v65, 0
    %73 = vmatpush.msra.mxu0 0.0
    %74 = vmatpush.msra.mxu0 0.0
    %75 = vmatpush.msra.mxu0 0.0
    %76 = vmatpush.msra.mxu0 0.0
    %77 = vmatpush.msra.mxu0 0.0
    %78 = vmatpush.msra.mxu0 0.0
    %79 = vmatpush.msra.mxu0 0.0
    %80 = vmatpush.msra.mxu0 0.0
    %81 = vmatpush.msra.mxu0 0.0
    %82 = vmatpush.msra.mxu0 0.0
    %83 = vmatpush.msra.mxu0 0.0
    %84 = vmatpush.msra.mxu0 0.0
    %85 = vmatpush.msra.mxu0 %v69
    %86 = vmatpush.msra.mxu0 %v68
    %87 = vmatpush.msra.mxu0 %v67
    %88 = vmatpush.msra.mxu0 %v66
    %89 = vmatmul.f32.gmra.mxu0 %v71
    %v90 = vpop.f32.mrf.mxu0
    %v91 = vadd.f32 0.0, %v90
    %92 = vdwg.mxu0
    %v93 = vld [vmem:[%s2] sm:$0x1]
    %v95 = vperm.slane %v93, 0
    %v97 = vmul.f32 %v91, %v95
    %v98 = vld [vmem:[%s3] sm:$0x1]
    %v100 = vperm.slane %v98, 0
    %v102 = vadd.f32 %v97, %v100
    %v103 = vmul.f32 %v102, %v102
    %v104 = vmul.f32 %v103, 0.0025
    %v105 = vsub.f32 1.0, %v104
    %v106 = vmax.f32 %v105, 0.0
    %v107 = vrsqrt.pop %v106
    %v108 = vmul.f32 %v107, %v106
    %v109 = vmul.f32 %v108, %v107
    %v110 = vmul.f32 0.5, %v109
    %v111 = vsub.f32 1.5, %v110
    %v112 = vmul.f32 %v107, %v111
    %v113 = vmul.f32 %v106, %v112
    %vm114 = vcmp.eq.f32.partialorder %v106, inf
    %v115 = vsel %vm114, %v106, %v113
    %vm116 = vcmp.eq.f32.partialorder %v106, 0.0
    %v117 = vand.u32 %v106, 2147483648
    %v118 = vsel %vm116, %v117, %v115
    %v119 = vmul.f32 %v102, 0.9950042
    %v120 = vmul.f32 %v118, 1.9966683
    %v121 = vsub.f32 %v119, %v120
    %v122 = vmul.f32 %v121, 1.442695
    %v123 = vpow.pop %v122
    %v124 = vmul.f32 %v102, 1.442695
    %v125 = vpow.pop %v124
    %126 = vadd.xlane.f32.xlu0 %v125
    %v127 = vpop.xlane.xlu0 %126
    %v128 = vsub.f32 %v127, %v125
    %v129 = vadd.f32 %v123, %v128
    %v130 = vrcp.pop %v129
    %v131 = vmul.f32 %v129, %v130
    %v132 = vsub.f32 1.0, %v131
    %v133 = vmul.f32 %v130, %v132
    %v134 = vadd.f32 %v130, %v133
    %vm135 = vweird.f32 %v129
    %vm136 = vweird.f32 %v130
    %vm137 = vmor %vm135, %vm136
    %v138 = vsel %vm137, %v130, %v134
    %v139 = vand.u32 2147483647, %v129
    %vm140 = vcmp.eq.f32.partialorder %v139, 8.507059e+37
    %v141 = vand.u32 %v129, 2147483648
    %v142 = vor.u32 1.1754944e-38, %v141
    %v143 = vsel %vm140, %v142, %v138
    %v144 = vmul.f32 %v123, %v143
    %145 = vst [vmem:[#allocation7] sm:$0xff] %v144
    // Predicated region
    $region26: #{tpu_custom_call.1} parent=1 // pred_check
      _
    $region27: #{tpu_custom_call.1} parent=1 // pred_check_branch
      %147 = sbr.rel (0) target = $region29
    $region28: #{tpu_custom_call.1} parent=1 // pred_region
      %149 = vsyncadd [#allocation4], 0
      %s151 = sshll.u32 [#allocation7], 4
      %s152 = int_to_ptr.vmem [resolvable:$true] %s151
      %s153 = sshll.u32 %s4, 4
      %s154 = int_to_ptr.hbm [resolvable:$true] %s153
      %156 = dma.vmem_to_hbm [thread:$0]  %s152, 128, %s154, [#allocation4]
    $region29: #{tpu_custom_call.1} parent=1 // pred_fallthru
      _
    // Predicated region
    $region30: #{tpu_custom_call.1} parent=1 // pred_check
      _
    $region31: #{tpu_custom_call.1} parent=1 // pred_check_branch
      %158 = sbr.rel (0) target = $region33
    $region32: #{tpu_custom_call.1} parent=1 // pred_region
      %160 = dma.done [#allocation4], 128
    $region33: #{tpu_custom_call.1} parent=1 // pred_fallthru
      _
    %161 = vsyncpa [#allocation3], 1
    %162 = vsyncpa [#allocation6], 1
    %163 = vsyncpa [#allocation4], 1

</llo_original>
